<compile_context>
chip_gen: v7x
topology: tpu7x:2x2x1
jax: 0.10.0
libtpu: 0.0.40
codegen_flags: <defaults>
</compile_context>

<pallas_src>
import functools

import jax
import jax.numpy as jnp
from jax.experimental import pallas as pl
from jax.experimental.pallas import tpu as pltpu


def _round_up(x, m):
    return (x + m - 1) // m * m


# ----------------------------------------------------------------------------
# Kernel
# ----------------------------------------------------------------------------
def qnetwork_kernel(sa_ref, p_ref, out_ref, *, k_pad, hp, offs):
    """Fused twin-Q forward on one batch tile: 4 lane-dense MXU matmuls."""
    f32 = jnp.float32

    x = sa_ref[...]                                   # (TB, K_pad)

    # Static, sublane-aligned views into the single packed parameter buffer.
    w1 = p_ref[pl.ds(offs["w1"], k_pad), :]           # (K_pad, HP) fused layer 1
    w2 = p_ref[pl.ds(offs["w2"], hp), :]              # (HP, HP)   block-diagonal
    w3 = p_ref[pl.ds(offs["w3"], hp), :]              # (HP, HP)   block-diagonal
    w4 = p_ref[pl.ds(offs["w4"], hp), :]              # (HP, HP)   cols 0,1 live
    b = p_ref[pl.ds(offs["b"], 8), :]                 # rows 0..3 = fused b1..b4

    h = jnp.maximum(jnp.dot(x, w1, preferred_element_type=f32) + b[0:1, :], 0.0)
    h = jnp.maximum(jnp.dot(h, w2, preferred_element_type=f32) + b[1:2, :], 0.0)
    h = jnp.maximum(jnp.dot(h, w3, preferred_element_type=f32) + b[2:3, :], 0.0)
    out = jnp.dot(h, w4, preferred_element_type=f32) + b[3:4, :]   # (TB, HP)

    # Columns 0 (q1) and 1 (q2) are the only meaningful lanes.
    out_ref[...] = out[:, 0:2].astype(out_ref.dtype)


# ----------------------------------------------------------------------------
# Host-side (one-time) parameter packing: head fusion + lane padding to 128.
# ----------------------------------------------------------------------------
def pack_params(params, state_dim, action_dim, hidden_dim, lane_pad=128):
    H = hidden_dim
    H2 = 2 * H
    HP = max(lane_pad, _round_up(H2, 128))            # lane-dense hidden width
    K = state_dim + action_dim
    K_pad = _round_up(K, 8)
    f32 = jnp.float32

    # Layer 1: concat both heads along output axis, pad rows/cols.
    w1 = jnp.concatenate([params["q1"]["l1"]["w"], params["q2"]["l1"]["w"]], axis=1)
    w1 = jnp.pad(w1, ((0, K_pad - K), (0, HP - H2)))                  # (K_pad, HP)

    def blkdiag(name, out1, out2):
        blk = jnp.zeros((HP, HP), f32)
        blk = blk.at[:H, :out1].set(params["q1"][name]["w"])
        blk = blk.at[H:H2, out1:out1 + out2].set(params["q2"][name]["w"])
        return blk

    w2 = blkdiag("l2", H, H)                                          # (HP, HP)
    w3 = blkdiag("l3", H, H)                                          # (HP, HP)
    w4 = blkdiag("l4", 1, 1)                                          # (HP, HP)

    def bias(name):
        b = jnp.concatenate([params["q1"][name]["b"], params["q2"][name]["b"]], axis=1)
        return jnp.pad(b, ((0, 0), (0, HP - b.shape[1])))

    biases = jnp.concatenate(
        [bias("l1"), bias("l2"), bias("l3"), bias("l4"),
         jnp.zeros((4, HP), f32)], axis=0)                            # (8, HP)

    packed = jnp.concatenate([w1, w2, w3, w4, biases], axis=0)        # (K_pad+3HP+8, HP)
    offs = {"w1": 0, "w2": K_pad, "w3": K_pad + HP, "w4": K_pad + 2 * HP,
            "b": K_pad + 3 * HP}
    return packed, offs


# ----------------------------------------------------------------------------
# Wrapper
# ----------------------------------------------------------------------------
def qnetwork_forward(state, action, packed, offs, *, tb=1024):
    B, S = state.shape
    A = action.shape[1]
    K = S + A
    K_pad = _round_up(K, 8)
    HP = packed.shape[1]
    p_rows = K_pad + 3 * HP + 8

    # Layout consistency check: a stale offs dict must fail loudly, not read junk.
    assert packed.shape == (p_rows, HP), (packed.shape, (p_rows, HP))
    assert offs == {"w1": 0, "w2": K_pad, "w3": K_pad + HP,
                    "w4": K_pad + 2 * HP, "b": K_pad + 3 * HP}, offs

    # Merge state+action once (single cheap pass), pad features to K_pad and
    # batch rows to a multiple of the tile size.
    sa = jnp.concatenate([state, action], axis=1)
    if K_pad != K:
        sa = jnp.pad(sa, ((0, 0), (0, K_pad - K)))
    TB = min(tb, _round_up(B, 8))                      # multiple of 8 sublanes
    Bp = _round_up(B, TB)
    if Bp != B:
        sa = jnp.pad(sa, ((0, Bp - B), (0, 0)))

    grid = (Bp // TB,)
    kernel = functools.partial(qnetwork_kernel, k_pad=K_pad, hp=HP, offs=offs)

    cost = pl.CostEstimate(
        flops=2 * Bp * (K_pad * HP + 3 * HP * HP),
        transcendentals=0,
        bytes_accessed=Bp * (K_pad + 2) * 4 + packed.size * 4,
    )

    out = pl.pallas_call(
        kernel,
        out_shape=jax.ShapeDtypeStruct((Bp, 2), jnp.float32),
        grid=grid,
        in_specs=[
            pl.BlockSpec((TB, K_pad), lambda i: (i, 0)),       # batch-tiled input
            pl.BlockSpec((p_rows, HP), lambda i: (0, 0)),      # VMEM-resident params
        ],
        out_specs=pl.BlockSpec((TB, 2), lambda i: (i, 0)),
        compiler_params=pltpu.CompilerParams(
            dimension_semantics=("parallel",)),
        cost_estimate=cost,
    )(sa, packed)

    out = out[:B]
    return out[:, 0:1], out[:, 1:2]


# ----------------------------------------------------------------------------
# Deterministic synthetic init + pure-JAX reference
# ----------------------------------------------------------------------------
def init_params(key, state_dim, action_dim, hidden_dim):
    in_dim = state_dim + action_dim
    dims = [(in_dim, hidden_dim), (hidden_dim, hidden_dim),
            (hidden_dim, hidden_dim), (hidden_dim, 1)]
    params = {}
    for head in ("q1", "q2"):
        params[head] = {}
        for i, (din, dout) in enumerate(dims, start=1):
            key, wk = jax.random.split(key)
            limit = (6.0 / (din + dout)) ** 0.5
            w = jax.random.uniform(wk, (din, dout), jnp.float32, -limit, limit)
            b = jnp.zeros((1, dout), jnp.float32)
            params[head][f"l{i}"] = {"w": w, "b": b}
    return params


def reference_forward(state, action, params):
    x = jnp.concatenate([state, action], axis=1)

    def head(p):
        h = jnp.maximum(x @ p["l1"]["w"] + p["l1"]["b"], 0.0)
        h = jnp.maximum(h @ p["l2"]["w"] + p["l2"]["b"], 0.0)
        h = jnp.maximum(h @ p["l3"]["w"] + p["l3"]["b"], 0.0)
        return h @ p["l4"]["w"] + p["l4"]["b"]

    return head(params["q1"]), head(params["q2"])


if __name__ == "__main__":
    state_dim, action_dim, hidden_dim = 12, 4, 32
    batch = 8

    key = jax.random.PRNGKey(0)
    key, ks, ka = jax.random.split(key, 3)
    state = jax.random.normal(ks, (batch, state_dim), jnp.float32)
    action = jax.random.normal(ka, (batch, action_dim), jnp.float32)
    params = init_params(key, state_dim, action_dim, hidden_dim)

    # One-time, off-the-hot-path parameter packing (head fusion + lane padding).
    packed, offs = pack_params(params, state_dim, action_dim, hidden_dim)
    packed = jax.block_until_ready(packed)

    q1, q2 = qnetwork_forward(state, action, packed, offs)
    jax.block_until_ready((q1, q2))

    r1, r2 = reference_forward(state, action, params)
    assert q1.shape == (batch, 1) and q2.shape == (batch, 1)
    assert jnp.allclose(q1, r1, atol=1e-5, rtol=1e-5)
    assert jnp.allclose(q2, r2, atol=1e-5, rtol=1e-5)

    print("KERNEL_OK")
</pallas_src>

<mosaic_0001>
module attributes {stable_mosaic.version = 11 : i64} {
  func.func @qnetwork_kernel(%arg0: i32, %arg1: memref<8x16xf32, #tpu.memory_space<vmem>>, %arg2: memref<408x128xf32, #tpu.memory_space<vmem>>, %arg3: memref<8x2xf32, #tpu.memory_space<vmem>>) attributes {dimension_semantics = [#tpu.dimension_semantics<parallel>], iteration_bounds = array<i64: 1>, scalar_prefetch = 0 : i64, scratch_operands = 0 : i64, tpu.core_type = #tpu.core_type<tc>, window_params = [{transform_indices = @transform_0, window_bounds = array<i64: 8, 16>}, {pipeline_mode = #tpu.pipeline_mode<synchronous>, transform_indices = @transform_1, window_bounds = array<i64: 408, 128>}, {transform_indices = @transform_2, window_bounds = array<i64: 8, 2>}]} {
    %c0 = arith.constant 0 : index
    %c0_0 = arith.constant 0 : index
    %0 = vector.load %arg1[%c0, %c0_0] : memref<8x16xf32, #tpu.memory_space<vmem>>, vector<8x16xf32>
    %c0_1 = arith.constant 0 : index
    %c0_2 = arith.constant 0 : index
    %1 = vector.load %arg2[%c0_1, %c0_2] : memref<408x128xf32, #tpu.memory_space<vmem>>, vector<16x128xf32>
    %c16 = arith.constant 16 : index
    %c0_3 = arith.constant 0 : index
    %2 = vector.load %arg2[%c16, %c0_3] : memref<408x128xf32, #tpu.memory_space<vmem>>, vector<128x128xf32>
    %c144 = arith.constant 144 : index
    %c0_4 = arith.constant 0 : index
    %3 = vector.load %arg2[%c144, %c0_4] : memref<408x128xf32, #tpu.memory_space<vmem>>, vector<128x128xf32>
    %c272 = arith.constant 272 : index
    %c0_5 = arith.constant 0 : index
    %4 = vector.load %arg2[%c272, %c0_5] : memref<408x128xf32, #tpu.memory_space<vmem>>, vector<128x128xf32>
    %c400 = arith.constant 400 : index
    %c0_6 = arith.constant 0 : index
    %5 = vector.load %arg2[%c400, %c0_6] : memref<408x128xf32, #tpu.memory_space<vmem>>, vector<8x128xf32>
    %cst = arith.constant dense<0.000000e+00> : vector<8x128xf32>
    %6 = tpu.matmul %0, %1, %cst {dimension_numbers = #tpu.dot_dimension_numbers<[1], [0], [0], [1], [0, 0, 1, 1], [], []>} : vector<8x16xf32>, vector<16x128xf32>, vector<8x128xf32> -> vector<8x128xf32>
    %7 = vector.extract_strided_slice %5 {offsets = [0, 0], sizes = [1, 128], strides = [1, 1]} : vector<8x128xf32> to vector<1x128xf32>
    %8 = vector.broadcast %7 : vector<1x128xf32> to vector<8x128xf32>
    %9 = arith.addf %6, %8 : vector<8x128xf32>
    %cst_7 = arith.constant 0.000000e+00 : f32
    %10 = vector.broadcast %cst_7 : f32 to vector<8x128xf32>
    %11 = arith.maximumf %9, %10 : vector<8x128xf32>
    %cst_8 = arith.constant dense<0.000000e+00> : vector<8x128xf32>
    %12 = tpu.matmul %11, %2, %cst_8 {dimension_numbers = #tpu.dot_dimension_numbers<[1], [0], [0], [1], [0, 0, 1, 1], [], []>} : vector<8x128xf32>, vector<128x128xf32>, vector<8x128xf32> -> vector<8x128xf32>
    %13 = vector.extract_strided_slice %5 {offsets = [1, 0], sizes = [1, 128], strides = [1, 1]} : vector<8x128xf32> to vector<1x128xf32>
    %14 = vector.broadcast %13 : vector<1x128xf32> to vector<8x128xf32>
    %15 = arith.addf %12, %14 : vector<8x128xf32>
    %cst_9 = arith.constant 0.000000e+00 : f32
    %16 = vector.broadcast %cst_9 : f32 to vector<8x128xf32>
    %17 = arith.maximumf %15, %16 : vector<8x128xf32>
    %cst_10 = arith.constant dense<0.000000e+00> : vector<8x128xf32>
    %18 = tpu.matmul %17, %3, %cst_10 {dimension_numbers = #tpu.dot_dimension_numbers<[1], [0], [0], [1], [0, 0, 1, 1], [], []>} : vector<8x128xf32>, vector<128x128xf32>, vector<8x128xf32> -> vector<8x128xf32>
    %19 = vector.extract_strided_slice %5 {offsets = [2, 0], sizes = [1, 128], strides = [1, 1]} : vector<8x128xf32> to vector<1x128xf32>
    %20 = vector.broadcast %19 : vector<1x128xf32> to vector<8x128xf32>
    %21 = arith.addf %18, %20 : vector<8x128xf32>
    %cst_11 = arith.constant 0.000000e+00 : f32
    %22 = vector.broadcast %cst_11 : f32 to vector<8x128xf32>
    %23 = arith.maximumf %21, %22 : vector<8x128xf32>
    %cst_12 = arith.constant dense<0.000000e+00> : vector<8x128xf32>
    %24 = tpu.matmul %23, %4, %cst_12 {dimension_numbers = #tpu.dot_dimension_numbers<[1], [0], [0], [1], [0, 0, 1, 1], [], []>} : vector<8x128xf32>, vector<128x128xf32>, vector<8x128xf32> -> vector<8x128xf32>
    %25 = vector.extract_strided_slice %5 {offsets = [3, 0], sizes = [1, 128], strides = [1, 1]} : vector<8x128xf32> to vector<1x128xf32>
    %26 = vector.broadcast %25 : vector<1x128xf32> to vector<8x128xf32>
    %27 = arith.addf %24, %26 : vector<8x128xf32>
    %28 = vector.extract_strided_slice %27 {offsets = [0, 0], sizes = [8, 2], strides = [1, 1]} : vector<8x128xf32> to vector<8x2xf32>
    %c0_13 = arith.constant 0 : index
    %c0_14 = arith.constant 0 : index
    %29 = vector.load %arg3[%c0_13, %c0_14] : memref<8x2xf32, #tpu.memory_space<vmem>>, vector<8x2xf32>
    tpu.vector_store %arg3[%c0_13, %c0_14], %28 {strides = array<i32>} : memref<8x2xf32, #tpu.memory_space<vmem>>, vector<8x2xf32>,
    return
  }
  func.func @transform_0(%arg0: i32) -> (i32, i32) {
    %c0_i32 = arith.constant 0 : i32
    %c0_i32_0 = arith.constant 0 : i32
    return %arg0, %c0_i32 : i32, i32
  }
  func.func @transform_1(%arg0: i32) -> (i32, i32) {
    %c0_i32 = arith.constant 0 : i32
    %c0_i32_0 = arith.constant 0 : i32
    %c0_i32_1 = arith.constant 0 : i32
    return %c0_i32, %c0_i32_0 : i32, i32
  }
  func.func @transform_2(%arg0: i32) -> (i32, i32) {
    %c0_i32 = arith.constant 0 : i32
    %c0_i32_0 = arith.constant 0 : i32
    return %arg0, %c0_i32 : i32, i32
  }
}

</mosaic_0001>

<llo_original>
// kernel: tpu_custom_call.1
$region0: #{tpu_custom_call.1}
  #allocation0 [shape = 'u32[]', space=smem, size = 0x4, offset = 0x4, fixed_abs, tag = 'smem constant byte address 0x4 - core index']
  #allocation1 [shape = 'u32[144,128]{1,0:T(1,128)}', space=vmem, size = 0x12000, scoped, tag = 'internal scratch']
  %s0 = inlined_call_operand.hbm [shape: f32[8,16], index: 0, kind: input, shape index: {}]
  %s1 = inlined_call_operand.hbm [shape: f32[408,128], index: 1, kind: input, shape index: {}]
  %s2 = inlined_call_operand.vmem [shape: f32[8,2], index: 2, kind: output, shape index: {}]
  %s3 = sld [smem:[#allocation0]]
  $region26: #{tpu_custom_call.1} parent=0
    _
  %s5 = ssub.s32 1, %s3
  %s6 = scalar_select 0, %s5, %s3
  $region1: #{tpu_custom_call.1} parent=0
    #allocation2 [shape = 'u8[4096]{0}', space=vmem, size = 0x1000, scoped, tag = 'input window, operand 0, single buffered']
    #allocation3 [shape = 's32[1]{0}', space=sflag, size = 0x4, scoped, tag = 'scoped memory for tpu_custom_call.1']
    #allocation4 [shape = 'u8[208896]{0}', space=vmem, size = 0x33000, scoped, tag = 'input window, operand 1, single buffered']
    #allocation5 [shape = 's32[1]{0}', space=sflag, size = 0x4, scoped, tag = 'scoped memory for tpu_custom_call.1']
    %7 = vsyncpa [#allocation3], 0
    %8 = vsyncpa [#allocation5], 0
    // Predicated region
    $region2: #{tpu_custom_call.1} parent=1 // pred_check
      _
    $region3: #{tpu_custom_call.1} parent=1 // pred_check_branch
      %10 = sbr.rel (0) target = $region5
    $region4: #{tpu_custom_call.1} parent=1 // pred_region
      %s12 = ssub.s32 128, 128
      %13 = vsyncadd [#allocation3], %s12
      %s15 = sshll.u32 [#allocation2], 4
      %s16 = int_to_ptr.vmem [resolvable:$true] %s15
      %18 = dma.hbm_to_vmem [thread:$0]  %s0, 128, %s16, [#allocation3]
    $region5: #{tpu_custom_call.1} parent=1 // pred_fallthru
      _
    // Predicated region
    $region6: #{tpu_custom_call.1} parent=1 // pred_check
      _
    $region7: #{tpu_custom_call.1} parent=1 // pred_check_branch
      %20 = sbr.rel (0) target = $region9
    $region8: #{tpu_custom_call.1} parent=1 // pred_region
      %s22 = ssub.s32 6528, 6528
      %23 = vsyncadd [#allocation5], %s22
      %s24 = sshll.u32 [#allocation4], 4
      %s25 = int_to_ptr.vmem [resolvable:$true] %s24
      %30 = dma.hbm_to_vmem [thread:$0]  %s1, 6528, %s25, [#allocation5], 128, 128, 8
    $region9: #{tpu_custom_call.1} parent=1 // pred_fallthru
      _
    // Predicated region
    $region10: #{tpu_custom_call.1} parent=1 // pred_check
      _
    $region11: #{tpu_custom_call.1} parent=1 // pred_check_branch
      %32 = sbr.rel (0) target = $region13
    $region12: #{tpu_custom_call.1} parent=1 // pred_region
      %33 = dma.done [#allocation3], 128
    $region13: #{tpu_custom_call.1} parent=1 // pred_fallthru
      _
    // Predicated region
    $region14: #{tpu_custom_call.1} parent=1 // pred_check
      _
    $region15: #{tpu_custom_call.1} parent=1 // pred_check_branch
      %35 = sbr.rel (0) target = $region17
    $region16: #{tpu_custom_call.1} parent=1 // pred_region
      %36 = dma.done [#allocation5], 6528
    $region17: #{tpu_custom_call.1} parent=1 // pred_fallthru
      _
    %v37 = vld [vmem:[#allocation2] sm:$0xff]
    %v38 = vld [vmem:[#allocation4] sm:$0xff]
    %v39 = vld [vmem:[#allocation4 + $0x8] sm:$0xff]
    %v40 = vld [vmem:[#allocation4 + $0x10] sm:$0xff]
    %v41 = vld [vmem:[#allocation4 + $0x18] sm:$0xff]
    %v42 = vld [vmem:[#allocation4 + $0x20] sm:$0xff]
    %v43 = vld [vmem:[#allocation4 + $0x28] sm:$0xff]
    %v44 = vld [vmem:[#allocation4 + $0x30] sm:$0xff]
    %v45 = vld [vmem:[#allocation4 + $0x38] sm:$0xff]
    %v46 = vld [vmem:[#allocation4 + $0x40] sm:$0xff]
    %v47 = vld [vmem:[#allocation4 + $0x48] sm:$0xff]
    %v48 = vld [vmem:[#allocation4 + $0x50] sm:$0xff]
    %v49 = vld [vmem:[#allocation4 + $0x58] sm:$0xff]
    %v50 = vld [vmem:[#allocation4 + $0x60] sm:$0xff]
    %v51 = vld [vmem:[#allocation4 + $0x68] sm:$0xff]
    %v52 = vld [vmem:[#allocation4 + $0x70] sm:$0xff]
    %v53 = vld [vmem:[#allocation4 + $0x78] sm:$0xff]
    %v54 = vld [vmem:[#allocation4 + $0x80] sm:$0xff]
    %v55 = vld [vmem:[#allocation4 + $0x88] sm:$0xff]
    %v56 = vld [vmem:[#allocation4 + $0x90] sm:$0xff]
    %v57 = vld [vmem:[#allocation4 + $0x98] sm:$0xff]
    %v58 = vld [vmem:[#allocation4 + $0xa0] sm:$0xff]
    %v59 = vld [vmem:[#allocation4 + $0xa8] sm:$0xff]
    %v60 = vld [vmem:[#allocation4 + $0xb0] sm:$0xff]
    %v61 = vld [vmem:[#allocation4 + $0xb8] sm:$0xff]
    %v62 = vld [vmem:[#allocation4 + $0xc0] sm:$0xff]
    %v63 = vld [vmem:[#allocation4 + $0xc8] sm:$0xff]
    %v64 = vld [vmem:[#allocation4 + $0xd0] sm:$0xff]
    %v65 = vld [vmem:[#allocation4 + $0xd8] sm:$0xff]
    %v66 = vld [vmem:[#allocation4 + $0xe0] sm:$0xff]
    %v67 = vld [vmem:[#allocation4 + $0xe8] sm:$0xff]
    %v68 = vld [vmem:[#allocation4 + $0xf0] sm:$0xff]
    %v69 = vld [vmem:[#allocation4 + $0xf8] sm:$0xff]
    %v70 = vld [vmem:[#allocation4 + $0x100] sm:$0xff]
    %v71 = vld [vmem:[#allocation4 + $0x108] sm:$0xff]
    %v72 = vld [vmem:[#allocation4 + $0x110] sm:$0xff]
    %v73 = vld [vmem:[#allocation4 + $0x118] sm:$0xff]
    %v74 = vld [vmem:[#allocation4 + $0x120] sm:$0xff]
    %v75 = vld [vmem:[#allocation4 + $0x128] sm:$0xff]
    %v76 = vld [vmem:[#allocation4 + $0x130] sm:$0xff]
    %v77 = vld [vmem:[#allocation4 + $0x138] sm:$0xff]
    %v78 = vld [vmem:[#allocation4 + $0x140] sm:$0xff]
    %v79 = vld [vmem:[#allocation4 + $0x148] sm:$0xff]
    %v80 = vld [vmem:[#allocation4 + $0x150] sm:$0xff]
    %v81 = vld [vmem:[#allocation4 + $0x158] sm:$0xff]
    %v82 = vld [vmem:[#allocation4 + $0x160] sm:$0xff]
    %v83 = vld [vmem:[#allocation4 + $0x168] sm:$0xff]
    %v84 = vld [vmem:[#allocation4 + $0x170] sm:$0xff]
    %v85 = vld [vmem:[#allocation4 + $0x178] sm:$0xff]
    %v86 = vld [vmem:[#allocation4 + $0x180] sm:$0xff]
    %v87 = vld [vmem:[#allocation4 + $0x188] sm:$0xff]
    %v88 = vld [vmem:[#allocation4 + $0x190] sm:$0xff]
    %v89 = vlaneseq
    %v90 = vshrl.u32 %v89, 7
    %v91 = vsub.s32 0, %v90
    %v92 = vrot.slane %v88, %v91
    %vm93 = vcmask 130048
    %v95 = vsel %vm93, %v37, 0
    %97 = vmatprep.subr.mxu0 0.0
    %98 = vmatpush1.msra.mxu0 %v38
    %99 = vmatprep.subr.mxu0 0.0
    %100 = vmatpush1.msra.mxu0 %v39
    %101 = vmatprep.subr.mxu0 0.0
    %102 = vmatpush1.msra.mxu0 0.0
    %103 = vmatprep.subr.mxu0 0.0
    %104 = vmatpush1.msra.mxu0 0.0
    %105 = vmatprep.subr.mxu0 0.0
    %106 = vmatpush1.msra.mxu0 0.0
    %107 = vmatprep.subr.mxu0 0.0
    %108 = vmatpush1.msra.mxu0 0.0
    %109 = vmatprep.subr.mxu0 0.0
    %110 = vmatpush1.msra.mxu0 0.0
    %111 = vmatprep.subr.mxu0 0.0
    %112 = vmatpush1.msra.mxu0 0.0
    %113 = vmatprep.subr.mxu0 0.0
    %114 = vmatpush1.msra.mxu0 0.0
    %115 = vmatprep.subr.mxu0 0.0
    %116 = vmatpush1.msra.mxu0 0.0
    %117 = vmatprep.subr.mxu0 0.0
    %118 = vmatpush1.msra.mxu0 0.0
    %119 = vmatprep.subr.mxu0 0.0
    %120 = vmatpush1.msra.mxu0 0.0
    %121 = vmatprep.subr.mxu0 0.0
    %122 = vmatpush1.msra.mxu0 0.0
    %123 = vmatprep.subr.mxu0 0.0
    %124 = vmatpush1.msra.mxu0 0.0
    %125 = vmatprep.subr.mxu0 0.0
    %126 = vmatpush1.msra.mxu0 0.0
    %127 = vmatprep.subr.mxu0 0.0
    %128 = vmatpush1.msra.mxu0 0.0
    %129 = vmatprep.subr.mxu0 0.0
    %130 = vmatpush1.msra.mxu0 0.0
    %131 = vmatprep.subr.mxu0 0.0
    %132 = vmatpush1.msra.mxu0 0.0
    %133 = vmatprep.subr.mxu0 0.0
    %134 = vmatpush1.msra.mxu0 0.0
    %135 = vmatprep.subr.mxu0 0.0
    %136 = vmatpush1.msra.mxu0 0.0
    %137 = vmatprep.subr.mxu0 0.0
    %138 = vmatpush1.msra.mxu0 0.0
    %139 = vmatprep.subr.mxu0 0.0
    %140 = vmatpush1.msra.mxu0 0.0
    %141 = vmatprep.subr.mxu0 0.0
    %142 = vmatpush1.msra.mxu0 0.0
    %143 = vmatprep.subr.mxu0 0.0
    %144 = vmatpush1.msra.mxu0 0.0
    %145 = vmatprep.subr.mxu0 0.0
    %146 = vmatpush1.msra.mxu0 0.0
    %147 = vmatprep.subr.mxu0 0.0
    %148 = vmatpush1.msra.mxu0 0.0
    %149 = vmatprep.subr.mxu0 0.0
    %150 = vmatpush1.msra.mxu0 0.0
    %151 = vmatprep.subr.mxu0 0.0
    %152 = vmatpush1.msra.mxu0 0.0
    %153 = vmatprep.subr.mxu0 0.0
    %154 = vmatpush1.msra.mxu0 0.0
    %155 = vmatprep.subr.mxu0 0.0
    %156 = vmatpush1.msra.mxu0 0.0
    %157 = vmatprep.subr.mxu0 0.0
    %158 = vmatpush1.msra.mxu0 0.0
    %159 = vmatprep.subr.mxu0 0.0
    %160 = vmatpush1.msra.mxu0 0.0
    %161 = vmatprep.mubr.f32.mxu0 0.0
    %162 = vmatmul.mubr.f32.gmra.mrb[0].mxu0 %v95
    %v163 = vpop.f32.mrb[0].mxu0
    %v164 = vadd.f32 %v92, %v163
    %v165 = vpop.f32.mrb[0].mxu0
    %166 = vdwg.mxu0
    %v167 = vmax.f32 %v164, 0.0
    %v168 = vlaneseq
    %v169 = vshrl.u32 %v168, 7
    %v170 = vsub.s32 1, %v169
    %v171 = vrot.slane %v88, %v170
    %172 = vmatprep.subr.mxu0 0.0
    %173 = vmatpush1.msra.mxu0 %v40
    %174 = vmatprep.subr.mxu0 0.0
    %175 = vmatpush1.msra.mxu0 %v41
    %176 = vmatprep.subr.mxu0 0.0
    %177 = vmatpush1.msra.mxu0 %v42
    %178 = vmatprep.subr.mxu0 0.0
    %179 = vmatpush1.msra.mxu0 %v43
    %180 = vmatprep.subr.mxu0 0.0
    %181 = vmatpush1.msra.mxu0 %v44
    %182 = vmatprep.subr.mxu0 0.0
    %183 = vmatpush1.msra.mxu0 %v45
    %184 = vmatprep.subr.mxu0 0.0
    %185 = vmatpush1.msra.mxu0 %v46
    %186 = vmatprep.subr.mxu0 0.0
    %187 = vmatpush1.msra.mxu0 %v47
    %188 = vmatprep.subr.mxu0 0.0
    %189 = vmatpush1.msra.mxu0 %v48
    %190 = vmatprep.subr.mxu0 0.0
    %191 = vmatpush1.msra.mxu0 %v49
    %192 = vmatprep.subr.mxu0 0.0
    %193 = vmatpush1.msra.mxu0 %v50
    %194 = vmatprep.subr.mxu0 0.0
    %195 = vmatpush1.msra.mxu0 %v51
    %196 = vmatprep.subr.mxu0 0.0
    %197 = vmatpush1.msra.mxu0 %v52
    %198 = vmatprep.subr.mxu0 0.0
    %199 = vmatpush1.msra.mxu0 %v53
    %200 = vmatprep.subr.mxu0 0.0
    %201 = vmatpush1.msra.mxu0 %v54
    %202 = vmatprep.subr.mxu0 0.0
    %203 = vmatpush1.msra.mxu0 %v55
    %204 = vmatprep.subr.mxu0 0.0
    %205 = vmatpush1.msra.mxu0 0.0
    %206 = vmatprep.subr.mxu0 0.0
    %207 = vmatpush1.msra.mxu0 0.0
    %208 = vmatprep.subr.mxu0 0.0
    %209 = vmatpush1.msra.mxu0 0.0
    %210 = vmatprep.subr.mxu0 0.0
    %211 = vmatpush1.msra.mxu0 0.0
    %212 = vmatprep.subr.mxu0 0.0
    %213 = vmatpush1.msra.mxu0 0.0
    %214 = vmatprep.subr.mxu0 0.0
    %215 = vmatpush1.msra.mxu0 0.0
    %216 = vmatprep.subr.mxu0 0.0
    %217 = vmatpush1.msra.mxu0 0.0
    %218 = vmatprep.subr.mxu0 0.0
    %219 = vmatpush1.msra.mxu0 0.0
    %220 = vmatprep.subr.mxu0 0.0
    %221 = vmatpush1.msra.mxu0 0.0
    %222 = vmatprep.subr.mxu0 0.0
    %223 = vmatpush1.msra.mxu0 0.0
    %224 = vmatprep.subr.mxu0 0.0
    %225 = vmatpush1.msra.mxu0 0.0
    %226 = vmatprep.subr.mxu0 0.0
    %227 = vmatpush1.msra.mxu0 0.0
    %228 = vmatprep.subr.mxu0 0.0
    %229 = vmatpush1.msra.mxu0 0.0
    %230 = vmatprep.subr.mxu0 0.0
    %231 = vmatpush1.msra.mxu0 0.0
    %232 = vmatprep.subr.mxu0 0.0
    %233 = vmatpush1.msra.mxu0 0.0
    %234 = vmatprep.subr.mxu0 0.0
    %235 = vmatpush1.msra.mxu0 0.0
    %236 = vmatprep.mubr.f32.mxu0 0.0
    %237 = vmatmul.mubr.f32.gmra.mrb[0].mxu0 %v167
    %v238 = vpop.f32.mrb[0].mxu0
    %v239 = vadd.f32 %v171, %v238
    %v240 = vpop.f32.mrb[0].mxu0
    %241 = vdwg.mxu0
    %v242 = vmax.f32 %v239, 0.0
    %v243 = vlaneseq
    %v244 = vshrl.u32 %v243, 7
    %v245 = vsub.s32 2, %v244
    %v246 = vrot.slane %v88, %v245
    %247 = vmatprep.subr.mxu0 0.0
    %248 = vmatpush1.msra.mxu0 %v56
    %249 = vmatprep.subr.mxu0 0.0
    %250 = vmatpush1.msra.mxu0 %v57
    %251 = vmatprep.subr.mxu0 0.0
    %252 = vmatpush1.msra.mxu0 %v58
    %253 = vmatprep.subr.mxu0 0.0
    %254 = vmatpush1.msra.mxu0 %v59
    %255 = vmatprep.subr.mxu0 0.0
    %256 = vmatpush1.msra.mxu0 %v60
    %257 = vmatprep.subr.mxu0 0.0
    %258 = vmatpush1.msra.mxu0 %v61
    %259 = vmatprep.subr.mxu0 0.0
    %260 = vmatpush1.msra.mxu0 %v62
    %261 = vmatprep.subr.mxu0 0.0
    %262 = vmatpush1.msra.mxu0 %v63
    %263 = vmatprep.subr.mxu0 0.0
    %264 = vmatpush1.msra.mxu0 %v64
    %265 = vmatprep.subr.mxu0 0.0
    %266 = vmatpush1.msra.mxu0 %v65
    %267 = vmatprep.subr.mxu0 0.0
    %268 = vmatpush1.msra.mxu0 %v66
    %269 = vmatprep.subr.mxu0 0.0
    %270 = vmatpush1.msra.mxu0 %v67
    %271 = vmatprep.subr.mxu0 0.0
    %272 = vmatpush1.msra.mxu0 %v68
    %273 = vmatprep.subr.mxu0 0.0
    %274 = vmatpush1.msra.mxu0 %v69
    %275 = vmatprep.subr.mxu0 0.0
    %276 = vmatpush1.msra.mxu0 %v70
    %277 = vmatprep.subr.mxu0 0.0
    %278 = vmatpush1.msra.mxu0 %v71
    %279 = vmatprep.subr.mxu0 0.0
    %280 = vmatpush1.msra.mxu0 0.0
    %281 = vmatprep.subr.mxu0 0.0
    %282 = vmatpush1.msra.mxu0 0.0
    %283 = vmatprep.subr.mxu0 0.0
    %284 = vmatpush1.msra.mxu0 0.0
    %285 = vmatprep.subr.mxu0 0.0
    %286 = vmatpush1.msra.mxu0 0.0
    %287 = vmatprep.subr.mxu0 0.0
    %288 = vmatpush1.msra.mxu0 0.0
    %289 = vmatprep.subr.mxu0 0.0
    %290 = vmatpush1.msra.mxu0 0.0
    %291 = vmatprep.subr.mxu0 0.0
    %292 = vmatpush1.msra.mxu0 0.0
    %293 = vmatprep.subr.mxu0 0.0
    %294 = vmatpush1.msra.mxu0 0.0
    %295 = vmatprep.subr.mxu0 0.0
    %296 = vmatpush1.msra.mxu0 0.0
    %297 = vmatprep.subr.mxu0 0.0
    %298 = vmatpush1.msra.mxu0 0.0
    %299 = vmatprep.subr.mxu0 0.0
    %300 = vmatpush1.msra.mxu0 0.0
    %301 = vmatprep.subr.mxu0 0.0
    %302 = vmatpush1.msra.mxu0 0.0
    %303 = vmatprep.subr.mxu0 0.0
    %304 = vmatpush1.msra.mxu0 0.0
    %305 = vmatprep.subr.mxu0 0.0
    %306 = vmatpush1.msra.mxu0 0.0
    %307 = vmatprep.subr.mxu0 0.0
    %308 = vmatpush1.msra.mxu0 0.0
    %309 = vmatprep.subr.mxu0 0.0
    %310 = vmatpush1.msra.mxu0 0.0
    %311 = vmatprep.mubr.f32.mxu0 0.0
    %312 = vmatmul.mubr.f32.gmra.mrb[0].mxu0 %v242
    %v313 = vpop.f32.mrb[0].mxu0
    %v314 = vadd.f32 %v246, %v313
    %v315 = vpop.f32.mrb[0].mxu0
    %316 = vdwg.mxu0
    %v317 = vmax.f32 %v314, 0.0
    %v318 = vlaneseq
    %v319 = vshrl.u32 %v318, 7
    %v320 = vsub.s32 3, %v319
    %v321 = vrot.slane %v88, %v320
    %322 = vmatprep.subr.mxu0 0.0
    %323 = vmatpush1.msra.mxu0 %v72
    %324 = vmatprep.subr.mxu0 0.0
    %325 = vmatpush1.msra.mxu0 %v73
    %326 = vmatprep.subr.mxu0 0.0
    %327 = vmatpush1.msra.mxu0 %v74
    %328 = vmatprep.subr.mxu0 0.0
    %329 = vmatpush1.msra.mxu0 %v75
    %330 = vmatprep.subr.mxu0 0.0
    %331 = vmatpush1.msra.mxu0 %v76
    %332 = vmatprep.subr.mxu0 0.0
    %333 = vmatpush1.msra.mxu0 %v77
    %334 = vmatprep.subr.mxu0 0.0
    %335 = vmatpush1.msra.mxu0 %v78
    %336 = vmatprep.subr.mxu0 0.0
    %337 = vmatpush1.msra.mxu0 %v79
    %338 = vmatprep.subr.mxu0 0.0
    %339 = vmatpush1.msra.mxu0 %v80
    %340 = vmatprep.subr.mxu0 0.0
    %341 = vmatpush1.msra.mxu0 %v81
    %342 = vmatprep.subr.mxu0 0.0
    %343 = vmatpush1.msra.mxu0 %v82
    %344 = vmatprep.subr.mxu0 0.0
    %345 = vmatpush1.msra.mxu0 %v83
    %346 = vmatprep.subr.mxu0 0.0
    %347 = vmatpush1.msra.mxu0 %v84
    %348 = vmatprep.subr.mxu0 0.0
    %349 = vmatpush1.msra.mxu0 %v85
    %350 = vmatprep.subr.mxu0 0.0
    %351 = vmatpush1.msra.mxu0 %v86
    %352 = vmatprep.subr.mxu0 0.0
    %353 = vmatpush1.msra.mxu0 %v87
    %354 = vmatprep.subr.mxu0 0.0
    %355 = vmatpush1.msra.mxu0 0.0
    %356 = vmatprep.subr.mxu0 0.0
    %357 = vmatpush1.msra.mxu0 0.0
    %358 = vmatprep.subr.mxu0 0.0
    %359 = vmatpush1.msra.mxu0 0.0
    %360 = vmatprep.subr.mxu0 0.0
    %361 = vmatpush1.msra.mxu0 0.0
    %362 = vmatprep.subr.mxu0 0.0
    %363 = vmatpush1.msra.mxu0 0.0
    %364 = vmatprep.subr.mxu0 0.0
    %365 = vmatpush1.msra.mxu0 0.0
    %366 = vmatprep.subr.mxu0 0.0
    %367 = vmatpush1.msra.mxu0 0.0
    %368 = vmatprep.subr.mxu0 0.0
    %369 = vmatpush1.msra.mxu0 0.0
    %370 = vmatprep.subr.mxu0 0.0
    %371 = vmatpush1.msra.mxu0 0.0
    %372 = vmatprep.subr.mxu0 0.0
    %373 = vmatpush1.msra.mxu0 0.0
    %374 = vmatprep.subr.mxu0 0.0
    %375 = vmatpush1.msra.mxu0 0.0
    %376 = vmatprep.subr.mxu0 0.0
    %377 = vmatpush1.msra.mxu0 0.0
    %378 = vmatprep.subr.mxu0 0.0
    %379 = vmatpush1.msra.mxu0 0.0
    %380 = vmatprep.subr.mxu0 0.0
    %381 = vmatpush1.msra.mxu0 0.0
    %382 = vmatprep.subr.mxu0 0.0
    %383 = vmatpush1.msra.mxu0 0.0
    %384 = vmatprep.subr.mxu0 0.0
    %385 = vmatpush1.msra.mxu0 0.0
    %386 = vmatprep.mubr.f32.mxu0 0.0
    %387 = vmatmul.mubr.f32.gmra.mrb[0].mxu0 %v317
    %v388 = vpop.f32.mrb[0].mxu0
    %v389 = vadd.f32 %v321, %v388
    %v390 = vpop.f32.mrb[0].mxu0
    %391 = vdwg.mxu0
    %vm392 = vcmask 15360
    %393 = vst.msk [vmem:[%s2] sm:$0xff] %vm392, %v389
    // Predicated region
    $region18: #{tpu_custom_call.1} parent=1 // pred_check
      _
    $region19: #{tpu_custom_call.1} parent=1 // pred_check_branch
      %395 = sbr.rel (0) target = $region21
    $region20: #{tpu_custom_call.1} parent=1 // pred_region
      _
    $region21: #{tpu_custom_call.1} parent=1 // pred_fallthru
      _
    // Predicated region
    $region22: #{tpu_custom_call.1} parent=1 // pred_check
      _
    $region23: #{tpu_custom_call.1} parent=1 // pred_check_branch
      %397 = sbr.rel (0) target = $region25
    $region24: #{tpu_custom_call.1} parent=1 // pred_region
      _
    $region25: #{tpu_custom_call.1} parent=1 // pred_fallthru
      _
    %398 = vsyncpa [#allocation3], 1
    %399 = vsyncpa [#allocation5], 1

</llo_original>
